<compile_context>
chip_gen: v7x
topology: tpu7x:2x2x1
jax: 0.10.0
libtpu: 0.0.40
codegen_flags: <defaults>
</compile_context>

<pallas_src>
import functools
import math

import jax
import jax.numpy as jnp
from jax.experimental import pallas as pl
from jax.experimental.pallas import tpu as pltpu

D_MODEL = 64
DROPOUT_P = 0.1
MAX_LEN = 5000

# Integer dropout threshold: drop iff hash_bits < round(p * 2^32).
_DROP_THRESHOLD_U32 = int(round(DROPOUT_P * (1 << 32)))
_KEEP_SCALE = 1.0 / (1.0 - DROPOUT_P)


# ---------------------------------------------------------------------------
# Parameter setup (glue, plain JAX): the sinusoidal positional-encoding table.
# Matches torch: pe[:, 0::2] = sin(pos*div), pe[:, 1::2] = cos(pos*div),
# then unsqueeze(0).transpose(0,1) -> [max_len, 1, d_model].
# ---------------------------------------------------------------------------
def make_pe_table(max_len: int, d_model: int) -> jnp.ndarray:
    position = jnp.arange(max_len, dtype=jnp.float32)[:, None]          # [L, 1]
    div_term = jnp.exp(
        jnp.arange(0, d_model, 2, dtype=jnp.float32)
        * (-math.log(10000.0) / d_model)
    )                                                                    # [D/2]
    angles = position * div_term                                         # [L, D/2]
    pe = jnp.zeros((max_len, d_model), dtype=jnp.float32)
    pe = pe.at[:, 0::2].set(jnp.sin(angles))
    pe = pe.at[:, 1::2].set(jnp.cos(angles))
    return pe[:, None, :]                                                # [L, 1, D]


# ---------------------------------------------------------------------------
# Pallas kernels (elementwise hot path on lane-dense 2D blocks).
# ---------------------------------------------------------------------------
def _pe_add_kernel(x_ref, pe_ref, o_ref, *, reps):
    # x_ref/o_ref: (TS, B*D); pe_ref: (TS, D).  Replicate PE across batch in
    # VMEM (XLU/VPU slots are idle here; HBM traffic is what matters).
    pe = pe_ref[...]
    if reps > 1:
        pe = jnp.tile(pe, (1, reps))
    o_ref[...] = x_ref[...] + pe


def _mix32(h):
    # murmur3-style finalizer: good enough bit mixing for a dropout mask.
    h = h ^ (h >> 16)
    h = h * jnp.uint32(0x7FEB352D)
    h = h ^ (h >> 15)
    h = h * jnp.uint32(0x846CA68B)
    h = h ^ (h >> 16)
    return h


def _pe_add_dropout_kernel(seed_ref, x_ref, pe_ref, o_ref, *, reps, n_cols):
    # Training forward: (x + pe) with inverted dropout, scale 1/(1-p).
    # Counter-based hash of (seed, global element index) -> uniform u32 bits;
    # drop iff bits < round(p * 2^32).  No stateful PRNG primitives needed.
    pe = pe_ref[...]
    if reps > 1:
        pe = jnp.tile(pe, (1, reps))
    y = x_ref[...] + pe

    ts, w = y.shape
    row0 = pl.program_id(0) * ts
    rows = jax.lax.broadcasted_iota(jnp.int32, (ts, w), 0) + row0
    cols = jax.lax.broadcasted_iota(jnp.int32, (ts, w), 1)
    idx = (rows * n_cols + cols).astype(jnp.uint32)
    seed = seed_ref[0].astype(jnp.uint32) * jnp.uint32(0x9E3779B9)
    bits = _mix32(idx ^ seed)
    keep = bits >= jnp.uint32(_DROP_THRESHOLD_U32)
    # Single store: either scaled value or zero.
    o_ref[...] = jnp.where(keep, y * _KEEP_SCALE, jnp.zeros_like(y))


# ---------------------------------------------------------------------------
# Tile-size selection: row tiles of the 2D [rows, W] view.
#   * ~4 MiB per x/out buffer (double-buffered) -> ~<= 20 MiB live VMEM once
#     the PE block is only D wide; explicit vmem_limit_bytes covers v5e.
#   * cap so the grid has >= 2 steps when there's enough work (v7x 2 TCs).
#   * `align` rows per tile: 8 for f32, 16 for bf16/f16 (packed sublanes).
# ---------------------------------------------------------------------------
def _choose_tile_rows(n_rows: int, row_bytes: int, align: int) -> int:
    target_bytes = 4 * 1024 * 1024
    ts = max(align, (target_bytes // max(row_bytes, 1)) // align * align)
    if n_rows >= 2 * align:
        half = (((n_rows + 1) // 2) + align - 1) // align * align
        ts = min(ts, half)
    else:
        ts = min(ts, n_rows)          # single full block == full dim is legal
    return ts


# ---------------------------------------------------------------------------
# Wrapper
# ---------------------------------------------------------------------------
def positional_encoding_forward(x, pe_table, *, training=False, seed=0,
                                donate_x=False):
    """x: [seq_len, batch, d_model] -> same shape (dropout(x + pe[:seq_len])).

    `seed` must be varied by the caller per call / layer / step in training
    mode, otherwise identical dropout masks are reused across calls.
    `donate_x=True` aliases x's buffer into the output (footprint only; the
    caller must not reuse x afterwards).
    """
    S, B, D = x.shape
    itemsize = jnp.dtype(x.dtype).itemsize

    # Lane-dense 2D views.  x.reshape is layout-preserving; PE stays [S, D]
    # and is replicated across batch inside the kernel (no HBM-side tile).
    rows, width, reps = S, B * D, B
    x2 = x.reshape(rows, width)
    pe2 = pe_table[:S, 0, :].astype(x.dtype)                 # [S, D]

    # B == 1 and narrow D: fold rows so the lane axis is 128-wide (unmasked
    # vst instead of masked vst.msk on half-empty vregs).
    if B == 1 and D < 128 and (128 % D) == 0 and S % (128 // D) == 0:
        fold = 128 // D
        rows, width, reps = S // fold, D * fold, 1
        x2 = x2.reshape(rows, width)
        pe2 = pe2.reshape(rows, width)

    pe_w = pe2.shape[1]
    align = 8 if itemsize >= 4 else 16
    TS = _choose_tile_rows(rows, width * itemsize, align)
    grid = (pl.cdiv(rows, TS),)
    out_shape = jax.ShapeDtypeStruct((rows, width), x.dtype)

    compiler_params = pltpu.CompilerParams(
        dimension_semantics=("parallel",),
        vmem_limit_bytes=32 * 1024 * 1024,
    )
    bytes_accessed = (2 * rows * width + rows * pe_w) * itemsize

    if not training:
        fn = pl.pallas_call(
            functools.partial(_pe_add_kernel, reps=reps),
            out_shape=out_shape,
            grid_spec=pltpu.PrefetchScalarGridSpec(
                num_scalar_prefetch=0,
                grid=grid,
                in_specs=[pl.BlockSpec((TS, width), lambda i: (i, 0)),
                          pl.BlockSpec((TS, pe_w), lambda i: (i, 0))],
                out_specs=pl.BlockSpec((TS, width), lambda i: (i, 0)),
            ),
            compiler_params=compiler_params,
            cost_estimate=pl.CostEstimate(
                flops=rows * width,
                transcendentals=0,
                bytes_accessed=bytes_accessed),
            input_output_aliases=({0: 0} if donate_x else {}),
        )
        out2 = fn(x2, pe2)
        return out2.reshape(S, B, D)

    seed_arr = jnp.asarray([seed], dtype=jnp.int32)
    fn = pl.pallas_call(
        functools.partial(_pe_add_dropout_kernel, reps=reps, n_cols=width),
        out_shape=out_shape,
        grid_spec=pltpu.PrefetchScalarGridSpec(
            num_scalar_prefetch=1,
            grid=grid,
            # index_maps receive the scalar-prefetch ref as a trailing arg.
            in_specs=[pl.BlockSpec((TS, width), lambda i, seed_ref: (i, 0)),
                      pl.BlockSpec((TS, pe_w), lambda i, seed_ref: (i, 0))],
            out_specs=pl.BlockSpec((TS, width), lambda i, seed_ref: (i, 0)),
        ),
        compiler_params=compiler_params,
        cost_estimate=pl.CostEstimate(
            flops=4 * rows * width,          # add + hash/compare + scale/select
            transcendentals=0,
            bytes_accessed=bytes_accessed),
    )
    out2 = fn(seed_arr, x2, pe2)
    return out2.reshape(S, B, D)


if __name__ == "__main__":
    seq_len, batch = 8, 2
    key = jax.random.PRNGKey(0)
    x = jax.random.normal(key, (seq_len, batch, D_MODEL), dtype=jnp.float32)

    pe_table = make_pe_table(MAX_LEN, D_MODEL)

    # Eval-mode forward (dropout == identity), deterministic.
    out = positional_encoding_forward(x, pe_table, training=False)
    out = jax.block_until_ready(out)

    ref = x + pe_table[:seq_len]
    assert out.shape == (seq_len, batch, D_MODEL)
    assert jnp.allclose(out, ref, atol=1e-6, rtol=1e-6)

    # Training-mode forward: every element is either 0 or (x+pe)/(1-p).
    out_tr = positional_encoding_forward(x, pe_table, training=True, seed=123)
    out_tr = jax.block_until_ready(out_tr)
    assert out_tr.shape == (seq_len, batch, D_MODEL)
    scaled = ref * _KEEP_SCALE
    ok = jnp.isclose(out_tr, 0.0, atol=1e-6) | jnp.isclose(out_tr, scaled,
                                                           atol=1e-5, rtol=1e-5)
    assert bool(jnp.all(ok))

    print("KERNEL_OK")
</pallas_src>

<mosaic_0001>
module attributes {stable_mosaic.version = 11 : i64} {
  func.func @_pe_add_kernel(%arg0: i32, %arg1: memref<8x128xf32, #tpu.memory_space<vmem>>, %arg2: memref<8x64xf32, #tpu.memory_space<vmem>>, %arg3: memref<8x128xf32, #tpu.memory_space<vmem>>) attributes {dimension_semantics = [#tpu.dimension_semantics<parallel>], iteration_bounds = array<i64: 1>, scalar_prefetch = 0 : i64, scratch_operands = 0 : i64, tpu.core_type = #tpu.core_type<tc>, window_params = [{transform_indices = @transform_0, window_bounds = array<i64: 8, 128>}, {transform_indices = @transform_1, window_bounds = array<i64: 8, 64>}, {transform_indices = @transform_2, window_bounds = array<i64: 8, 128>}]} {
    %c0 = arith.constant 0 : index
    %c0_0 = arith.constant 0 : index
    %0 = vector.load %arg2[%c0, %c0_0] : memref<8x64xf32, #tpu.memory_space<vmem>>, vector<8x64xf32>
    %1 = tpu.concatenate %0, %0 in 1 : vector<8x64xf32>, vector<8x64xf32> -> vector<8x128xf32>
    %c0_1 = arith.constant 0 : index
    %c0_2 = arith.constant 0 : index
    %2 = vector.load %arg1[%c0_1, %c0_2] : memref<8x128xf32, #tpu.memory_space<vmem>>, vector<8x128xf32>
    %3 = arith.addf %2, %1 : vector<8x128xf32>
    %c0_3 = arith.constant 0 : index
    %c0_4 = arith.constant 0 : index
    %4 = vector.load %arg3[%c0_3, %c0_4] : memref<8x128xf32, #tpu.memory_space<vmem>>, vector<8x128xf32>
    tpu.vector_store %arg3[%c0_3, %c0_4], %3 {strides = array<i32>} : memref<8x128xf32, #tpu.memory_space<vmem>>, vector<8x128xf32>,
    return
  }
  func.func @transform_0(%arg0: i32) -> (i32, i32) {
    %c0_i32 = arith.constant 0 : i32
    %c0_i32_0 = arith.constant 0 : i32
    return %arg0, %c0_i32 : i32, i32
  }
  func.func @transform_1(%arg0: i32) -> (i32, i32) {
    %c0_i32 = arith.constant 0 : i32
    %c0_i32_0 = arith.constant 0 : i32
    return %arg0, %c0_i32 : i32, i32
  }
  func.func @transform_2(%arg0: i32) -> (i32, i32) {
    %c0_i32 = arith.constant 0 : i32
    %c0_i32_0 = arith.constant 0 : i32
    return %arg0, %c0_i32 : i32, i32
  }
}

</mosaic_0001>

<llo_original>
// kernel: tpu_custom_call.1
$region0: #{tpu_custom_call.1}
  #allocation0 [shape = 'u32[]', space=smem, size = 0x4, offset = 0x4, fixed_abs, tag = 'smem constant byte address 0x4 - core index']
  #allocation1 [shape = 'u32[144,128]{1,0:T(1,128)}', space=vmem, size = 0x12000, scoped, tag = 'internal scratch']
  %s0 = inlined_call_operand.hbm [shape: f32[8,128], index: 0, kind: input, shape index: {}]
  %s1 = inlined_call_operand.hbm [shape: f32[8,64], index: 1, kind: input, shape index: {}]
  %s2 = inlined_call_operand.hbm [shape: f32[8,128], index: 2, kind: output, shape index: {}]
  %s3 = sld [smem:[#allocation0]]
  $region26: #{tpu_custom_call.1} parent=0
    _
  %s5 = ssub.s32 1, %s3
  %s6 = scalar_select 0, %s5, %s3
  $region1: #{tpu_custom_call.1} parent=0
    #allocation2 [shape = 'u8[4096]{0}', space=vmem, size = 0x1000, scoped, tag = 'input window, operand 0, single buffered']
    #allocation3 [shape = 's32[1]{0}', space=sflag, size = 0x4, scoped, tag = 'scoped memory for tpu_custom_call.1']
    #allocation4 [shape = 's32[1]{0}', space=sflag, size = 0x4, scoped, tag = 'scoped memory for tpu_custom_call.1']
    #allocation5 [shape = 'u8[4096]{0}', space=vmem, size = 0x1000, scoped, tag = 'input window, operand 1, single buffered']
    #allocation6 [shape = 's32[1]{0}', space=sflag, size = 0x4, scoped, tag = 'scoped memory for tpu_custom_call.1']
    #allocation7 [shape = 'u8[4096]{0}', space=vmem, size = 0x1000, scoped, tag = 'output window, operand 0, single buffered']
    %7 = vsyncpa [#allocation3], 0
    %8 = vsyncpa [#allocation6], 0
    %9 = vsyncpa [#allocation4], 0
    // Predicated region
    $region2: #{tpu_custom_call.1} parent=1 // pred_check
      _
    $region3: #{tpu_custom_call.1} parent=1 // pred_check_branch
      %11 = sbr.rel (0) target = $region5
    $region4: #{tpu_custom_call.1} parent=1 // pred_region
      %s13 = ssub.s32 128, 128
      %14 = vsyncadd [#allocation3], %s13
      %s16 = sshll.u32 [#allocation2], 4
      %s17 = int_to_ptr.vmem [resolvable:$true] %s16
      %19 = dma.hbm_to_vmem [thread:$0]  %s0, 128, %s17, [#allocation3]
    $region5: #{tpu_custom_call.1} parent=1 // pred_fallthru
      _
    // Predicated region
    $region6: #{tpu_custom_call.1} parent=1 // pred_check
      _
    $region7: #{tpu_custom_call.1} parent=1 // pred_check_branch
      %21 = sbr.rel (0) target = $region9
    $region8: #{tpu_custom_call.1} parent=1 // pred_region
      %s23 = ssub.s32 128, 128
      %24 = vsyncadd [#allocation6], %s23
      %s26 = sshll.u32 [#allocation5], 4
      %s27 = int_to_ptr.vmem [resolvable:$true] %s26
      %29 = dma.hbm_to_vmem [thread:$0]  %s1, 128, %s27, [#allocation6]
    $region9: #{tpu_custom_call.1} parent=1 // pred_fallthru
      _
    // Predicated region
    $region10: #{tpu_custom_call.1} parent=1 // pred_check
      _
    $region11: #{tpu_custom_call.1} parent=1 // pred_check_branch
      %31 = sbr.rel (0) target = $region13
    $region12: #{tpu_custom_call.1} parent=1 // pred_region
      %32 = dma.done [#allocation3], 128
    $region13: #{tpu_custom_call.1} parent=1 // pred_fallthru
      _
    // Predicated region
    $region14: #{tpu_custom_call.1} parent=1 // pred_check
      _
    $region15: #{tpu_custom_call.1} parent=1 // pred_check_branch
      %34 = sbr.rel (0) target = $region17
    $region16: #{tpu_custom_call.1} parent=1 // pred_region
      %35 = dma.done [#allocation6], 128
    $region17: #{tpu_custom_call.1} parent=1 // pred_fallthru
      _
    %v36 = vld [vmem:[#allocation5] sm:$0xff]
    %38 = vrot.lane.b32.xlu0 %v36, 64
    %v39 = vpop.permute.xlu0 %38
    %vm41 = vcmask 523264
    %v42 = vsel %vm41, %v36, %v39
    %v43 = vld [vmem:[#allocation2] sm:$0xff]
    %v44 = vadd.f32 %v43, %v42
    %45 = vst [vmem:[#allocation7] sm:$0xff] %v44
    // Predicated region
    $region18: #{tpu_custom_call.1} parent=1 // pred_check
      _
    $region19: #{tpu_custom_call.1} parent=1 // pred_check_branch
      %47 = sbr.rel (0) target = $region21
    $region20: #{tpu_custom_call.1} parent=1 // pred_region
      %s49 = ssub.s32 128, 128
      %50 = vsyncadd [#allocation4], %s49
      %s52 = sshll.u32 [#allocation7], 4
      %s53 = int_to_ptr.vmem [resolvable:$true] %s52
      %55 = dma.vmem_to_hbm [thread:$0]  %s53, 128, %s2, [#allocation4]
    $region21: #{tpu_custom_call.1} parent=1 // pred_fallthru
      _
    // Predicated region
    $region22: #{tpu_custom_call.1} parent=1 // pred_check
      _
    $region23: #{tpu_custom_call.1} parent=1 // pred_check_branch
      %57 = sbr.rel (0) target = $region25
    $region24: #{tpu_custom_call.1} parent=1 // pred_region
      %58 = dma.done [#allocation4], 128
    $region25: #{tpu_custom_call.1} parent=1 // pred_fallthru
      _
    %59 = vsyncpa [#allocation3], 1
    %60 = vsyncpa [#allocation6], 1
    %61 = vsyncpa [#allocation4], 1

</llo_original>
